<compile_context>
chip_gen: v5e
topology: v5e:2x2
jax: 0.10.0
libtpu: 0.0.40
codegen_flags: <defaults>
</compile_context>

<pallas_src>
import functools

import jax
import jax.numpy as jnp
from jax.experimental import pallas as pl
from jax.experimental.pallas import tpu as pltpu

_LANE = 128
_SUBLANE = 8
_SUB_ROWS = 256                  # in-kernel streaming chunk (128 KiB f32) -> no vreg spills
_TARGET_BLOCK_BYTES = 4 << 20    # ~4 MiB per input per grid step
_VMEM_LIMIT_BYTES = 32 << 20     # headroom over 16 MiB of double-buffered input blocks


def _mse_kernel(x_ref, y_ref, o_ref, *, rows, block_rows, sub_rows, tiles_per_core):
    c = pl.program_id(0)   # parallel chunk (megacore on v7x)
    i = pl.program_id(1)   # sequential reduction axis

    @pl.when(i == 0)
    def _():
        o_ref[...] = jnp.zeros_like(o_ref)

    # UNCLAMPED global row offset of this tile (covers clamped phantom tiles).
    start_row = (c * tiles_per_core + i) * block_rows
    n_sub = block_rows // sub_rows
    groups = sub_rows // _SUBLANE
    unroll = min(4, n_sub)

    def load_sq(s):
        off = pl.multiple_of(s * sub_rows, sub_rows)
        xs = x_ref[pl.ds(off, sub_rows), :].astype(jnp.float32)
        ys = y_ref[pl.ds(off, sub_rows), :].astype(jnp.float32)
        d = xs - ys
        return off, d * d

    # Fast path: every row in this block is real data -> no mask work at all.
    @pl.when(start_row + block_rows <= rows)
    def _():
        def body(s, acc):
            _, sq = load_sq(s)
            return acc + jnp.sum(sq.reshape(groups, _SUBLANE, _LANE), axis=0)

        o_ref[...] += jax.lax.fori_loop(
            0, n_sub, body, jnp.zeros((_SUBLANE, _LANE), jnp.float32),
            unroll=unroll)

    # Edge path: partial last tile and/or clamped phantom tiles -> mask rows.
    @pl.when(start_row + block_rows > rows)
    def _():
        def body(s, acc):
            off, sq = load_sq(s)
            row_ids = (start_row + off
                       + jax.lax.broadcasted_iota(jnp.int32, (sub_rows, _LANE), 0))
            sq = jnp.where(row_ids < rows, sq, 0.0)
            return acc + jnp.sum(sq.reshape(groups, _SUBLANE, _LANE), axis=0)

        o_ref[...] += jax.lax.fori_loop(
            0, n_sub, body, jnp.zeros((_SUBLANE, _LANE), jnp.float32),
            unroll=unroll)


def mse(input, target):
    """Pallas equivalent of MSE.forward: ((input - target) ** 2).mean()."""
    assert input.shape == target.shape, "input/target shapes must match"
    n = input.size
    assert n > 0

    xf = jnp.ravel(input)
    yf = jnp.ravel(target)

    tile_elems = _SUBLANE * _LANE      # 1024
    rem = n % tile_elems
    n_main = n - rem

    # Ragged tail (< 1024 elems): plain jnp, no full-array padding copy.
    tail_sum = jnp.float32(0.0)
    if rem:
        dt = xf[n_main:].astype(jnp.float32) - yf[n_main:].astype(jnp.float32)
        tail_sum = jnp.sum(dt * dt)
        if n_main == 0:
            return tail_sum / n
        xf = xf[:n_main]
        yf = yf[:n_main]

    rows = n_main // _LANE             # multiple of 8
    x2 = xf.reshape(rows, _LANE)
    y2 = yf.reshape(rows, _LANE)

    # Size the block by bytes (dtype-aware), rounded to a multiple of _SUB_ROWS.
    itemsize = jnp.dtype(x2.dtype).itemsize
    target_rows = max(
        _SUB_ROWS,
        (_TARGET_BLOCK_BYTES // (_LANE * itemsize)) // _SUB_ROWS * _SUB_ROWS)

    if rows <= _SUB_ROWS:
        sub_rows = rows
        block_rows = rows
    else:
        sub_rows = _SUB_ROWS
        block_rows = min(target_rows, (rows // _SUB_ROWS) * _SUB_ROWS)

    num_tiles = pl.cdiv(rows, block_rows)
    num_chunks = 2 if num_tiles >= 2 else 1        # megacore split on v7x
    tiles_per_core = pl.cdiv(num_tiles, num_chunks)

    def in_index_map(c, i):
        # Clamp phantom tail tiles onto the last real tile; the in-kernel
        # (gated) row mask zeroes their contribution.
        tile = jnp.minimum(c * tiles_per_core + i, num_tiles - 1)
        return (tile, 0)

    kernel = functools.partial(
        _mse_kernel, rows=rows, block_rows=block_rows,
        sub_rows=sub_rows, tiles_per_core=tiles_per_core)

    cost = pl.CostEstimate(
        flops=3 * n,
        transcendentals=0,
        bytes_accessed=2 * n * int(itemsize) + num_chunks * _SUBLANE * _LANE * 4)

    partials = pl.pallas_call(
        kernel,
        out_shape=jax.ShapeDtypeStruct((num_chunks * _SUBLANE, _LANE), jnp.float32),
        grid_spec=pltpu.PrefetchScalarGridSpec(
            num_scalar_prefetch=0,
            grid=(num_chunks, tiles_per_core),
            in_specs=[
                pl.BlockSpec((block_rows, _LANE), in_index_map),
                pl.BlockSpec((block_rows, _LANE), in_index_map),
            ],
            out_specs=pl.BlockSpec((_SUBLANE, _LANE), lambda c, i: (c, 0)),
        ),
        compiler_params=pltpu.CompilerParams(
            dimension_semantics=("parallel", "arbitrary"),
            vmem_limit_bytes=_VMEM_LIMIT_BYTES,
        ),
        cost_estimate=cost,
    )(x2, y2)

    # Single tiny cross-lane reduction + mean normalization in the wrapper.
    return (jnp.sum(partials) + tail_sum) / n


if __name__ == "__main__":
    key = jax.random.PRNGKey(0)
    k1, k2, k3, k4, k5, k6 = jax.random.split(key, 6)

    # NCHW images, consistent with the denoising-project usage.
    x = jax.random.normal(k1, (2, 4, 16, 16), dtype=jnp.float32)
    t = jax.random.normal(k2, (2, 4, 16, 16), dtype=jnp.float32)
    loss = jax.block_until_ready(mse(x, t))
    ref = jnp.mean((x - t) ** 2)
    assert jnp.allclose(loss, ref, rtol=1e-5, atol=1e-6), (loss, ref)

    # Ragged element count: exercises the jnp tail path (no padding copy).
    x2 = jax.random.normal(k3, (3, 5, 7, 11), dtype=jnp.float32)
    t2 = jax.random.normal(k4, (3, 5, 7, 11), dtype=jnp.float32)
    loss2 = jax.block_until_ready(mse(x2, t2))
    ref2 = jnp.mean((x2 - t2) ** 2)
    assert jnp.allclose(loss2, ref2, rtol=1e-5, atol=1e-6), (loss2, ref2)

    # Medium case: multiple big tiles + partial last tile + clamped phantom
    # tile, exercising the gated edge-mask path and the 2-way parallel split.
    x3 = jax.random.normal(k5, (1, 3, 896, 896), dtype=jnp.float32)
    t3 = jax.random.normal(k6, (1, 3, 896, 896), dtype=jnp.float32)
    loss3 = jax.block_until_ready(mse(x3, t3))
    ref3 = jnp.mean((x3 - t3) ** 2)
    assert jnp.allclose(loss3, ref3, rtol=1e-4, atol=1e-6), (loss3, ref3)

    print("KERNEL_OK")
</pallas_src>

<mosaic_0001>
module attributes {stable_mosaic.version = 11 : i64} {
  func.func @_mse_kernel(%arg0: i32, %arg1: i32, %arg2: memref<16x128xf32, #tpu.memory_space<vmem>>, %arg3: memref<16x128xf32, #tpu.memory_space<vmem>>, %arg4: memref<8x128xf32, #tpu.memory_space<vmem>>) attributes {dimension_semantics = [#tpu.dimension_semantics<parallel>, #tpu.dimension_semantics<arbitrary>], iteration_bounds = array<i64: 1, 1>, scalar_prefetch = 0 : i64, scratch_operands = 0 : i64, tpu.core_type = #tpu.core_type<tc>, window_params = [{transform_indices = @transform_0, window_bounds = array<i64: 16, 128>}, {transform_indices = @transform_1, window_bounds = array<i64: 16, 128>}, {transform_indices = @transform_2, window_bounds = array<i64: 8, 128>}]} {
    %c0_i32 = arith.constant 0 : i32
    %0 = arith.cmpi eq, %arg1, %c0_i32 : i32
    %1 = arith.extui %0 : i1 to i32
    %c0_i32_0 = arith.constant 0 : i32
    %2 = arith.cmpi ne, %1, %c0_i32_0 : i32
    scf.if %2 {
      %cst = arith.constant 0.000000e+00 : f32
      %14 = vector.broadcast %cst : f32 to vector<8x128xf32>
      %c0 = arith.constant 0 : index
      %c0_7 = arith.constant 0 : index
      %15 = vector.load %arg4[%c0, %c0_7] : memref<8x128xf32, #tpu.memory_space<vmem>>, vector<8x128xf32>
      tpu.vector_store %arg4[%c0, %c0_7], %14 {strides = array<i32>} : memref<8x128xf32, #tpu.memory_space<vmem>>, vector<8x128xf32>,
    } else {
    }
    %c1_i32 = arith.constant 1 : i32
    %3 = arith.muli %arg0, %c1_i32 : i32
    %4 = arith.addi %3, %arg1 : i32
    %c16_i32 = arith.constant 16 : i32
    %5 = arith.muli %4, %c16_i32 : i32
    %c16_i32_1 = arith.constant 16 : i32
    %6 = arith.addi %5, %c16_i32_1 : i32
    %c16_i32_2 = arith.constant 16 : i32
    %7 = arith.cmpi sle, %6, %c16_i32_2 : i32
    %8 = arith.extui %7 : i1 to i32
    %c0_i32_3 = arith.constant 0 : i32
    %9 = arith.cmpi ne, %8, %c0_i32_3 : i32
    scf.if %9 {
      %c0 = arith.constant 0 : index
      %c0_7 = arith.constant 0 : index
      %14 = vector.load %arg4[%c0, %c0_7] : memref<8x128xf32, #tpu.memory_space<vmem>>, vector<8x128xf32>
      %cst = arith.constant 0.000000e+00 : f32
      %15 = vector.broadcast %cst : f32 to vector<8x128xf32>
      %c0_i32_8 = arith.constant 0 : i32
      %c16_i32_9 = arith.constant 16 : i32
      %16 = arith.muli %c0_i32_8, %c16_i32_9 : i32
      %17 = tpu.assume_multiple %16, 16 : i32
      %18 = arith.index_cast %17 : i32 to index
      %c0_10 = arith.constant 0 : index
      %19 = vector.load %arg2[%18, %c0_10] : memref<16x128xf32, #tpu.memory_space<vmem>>, vector<16x128xf32>
      %20 = arith.index_cast %17 : i32 to index
      %c0_11 = arith.constant 0 : index
      %21 = vector.load %arg3[%20, %c0_11] : memref<16x128xf32, #tpu.memory_space<vmem>>, vector<16x128xf32>
      %22 = arith.subf %19, %21 : vector<16x128xf32>
      %23 = arith.mulf %22, %22 : vector<16x128xf32>
      %24 = vector.shape_cast %23 : vector<16x128xf32> to vector<2x8x128xf32>
      %cst_12 = arith.constant dense<0.000000e+00> : vector<8x128xf32>
      %25 = vector.multi_reduction <add>, %24, %cst_12 [0] : vector<2x8x128xf32> to vector<8x128xf32>
      %26 = arith.addf %15, %25 : vector<8x128xf32>
      %c1_i32_13 = arith.constant 1 : i32
      %27 = arith.addf %14, %26 : vector<8x128xf32>
      %c0_14 = arith.constant 0 : index
      %c0_15 = arith.constant 0 : index
      %28 = vector.load %arg4[%c0_14, %c0_15] : memref<8x128xf32, #tpu.memory_space<vmem>>, vector<8x128xf32>
      tpu.vector_store %arg4[%c0_14, %c0_15], %27 {strides = array<i32>} : memref<8x128xf32, #tpu.memory_space<vmem>>, vector<8x128xf32>,
    } else {
    }
    %c16_i32_4 = arith.constant 16 : i32
    %10 = arith.addi %5, %c16_i32_4 : i32
    %c16_i32_5 = arith.constant 16 : i32
    %11 = arith.cmpi sgt, %10, %c16_i32_5 : i32
    %12 = arith.extui %11 : i1 to i32
    %c0_i32_6 = arith.constant 0 : i32
    %13 = arith.cmpi ne, %12, %c0_i32_6 : i32
    scf.if %13 {
      %c0 = arith.constant 0 : index
      %c0_7 = arith.constant 0 : index
      %14 = vector.load %arg4[%c0, %c0_7] : memref<8x128xf32, #tpu.memory_space<vmem>>, vector<8x128xf32>
      %cst = arith.constant 0.000000e+00 : f32
      %15 = vector.broadcast %cst : f32 to vector<8x128xf32>
      %c0_i32_8 = arith.constant 0 : i32
      %c16_i32_9 = arith.constant 16 : i32
      %16 = arith.muli %c0_i32_8, %c16_i32_9 : i32
      %17 = tpu.assume_multiple %16, 16 : i32
      %18 = arith.index_cast %17 : i32 to index
      %c0_10 = arith.constant 0 : index
      %19 = vector.load %arg2[%18, %c0_10] : memref<16x128xf32, #tpu.memory_space<vmem>>, vector<16x128xf32>
      %20 = arith.index_cast %17 : i32 to index
      %c0_11 = arith.constant 0 : index
      %21 = vector.load %arg3[%20, %c0_11] : memref<16x128xf32, #tpu.memory_space<vmem>>, vector<16x128xf32>
      %22 = arith.subf %19, %21 : vector<16x128xf32>
      %23 = arith.mulf %22, %22 : vector<16x128xf32>
      %24 = arith.addi %5, %17 : i32
      %25 = tpu.iota {dimensions = array<i32: 0>} : vector<16x128xi32>
      %26 = vector.broadcast %24 : i32 to vector<16x128xi32>
      %27 = arith.addi %26, %25 : vector<16x128xi32>
      %c16_i32_12 = arith.constant 16 : i32
      %28 = vector.broadcast %c16_i32_12 : i32 to vector<16x128xi32>
      %29 = arith.cmpi slt, %27, %28 : vector<16x128xi32>
      %cst_13 = arith.constant 0.000000e+00 : f32
      %30 = vector.broadcast %cst_13 : f32 to vector<16x128xf32>
      %31 = arith.select %29, %23, %30 : vector<16x128xi1>, vector<16x128xf32>
      %32 = vector.shape_cast %31 : vector<16x128xf32> to vector<2x8x128xf32>
      %cst_14 = arith.constant dense<0.000000e+00> : vector<8x128xf32>
      %33 = vector.multi_reduction <add>, %32, %cst_14 [0] : vector<2x8x128xf32> to vector<8x128xf32>
      %34 = arith.addf %15, %33 : vector<8x128xf32>
      %c1_i32_15 = arith.constant 1 : i32
      %35 = arith.addf %14, %34 : vector<8x128xf32>
      %c0_16 = arith.constant 0 : index
      %c0_17 = arith.constant 0 : index
      %36 = vector.load %arg4[%c0_16, %c0_17] : memref<8x128xf32, #tpu.memory_space<vmem>>, vector<8x128xf32>
      tpu.vector_store %arg4[%c0_16, %c0_17], %35 {strides = array<i32>} : memref<8x128xf32, #tpu.memory_space<vmem>>, vector<8x128xf32>,
    } else {
    }
    return
  }
  func.func @transform_0(%arg0: i32, %arg1: i32) -> (i32, i32) {
    %c1_i32 = arith.constant 1 : i32
    %0 = arith.muli %arg0, %c1_i32 : i32
    %1 = arith.addi %0, %arg1 : i32
    %c0_i32 = arith.constant 0 : i32
    %2 = arith.minsi %1, %c0_i32 : i32
    %c0_i32_0 = arith.constant 0 : i32
    %c0_i32_1 = arith.constant 0 : i32
    return %2, %c0_i32_0 : i32, i32
  }
  func.func @transform_1(%arg0: i32, %arg1: i32) -> (i32, i32) {
    %c1_i32 = arith.constant 1 : i32
    %0 = arith.muli %arg0, %c1_i32 : i32
    %1 = arith.addi %0, %arg1 : i32
    %c0_i32 = arith.constant 0 : i32
    %2 = arith.minsi %1, %c0_i32 : i32
    %c0_i32_0 = arith.constant 0 : i32
    %c0_i32_1 = arith.constant 0 : i32
    return %2, %c0_i32_0 : i32, i32
  }
  func.func @transform_2(%arg0: i32, %arg1: i32) -> (i32, i32) {
    %c0_i32 = arith.constant 0 : i32
    %c0_i32_0 = arith.constant 0 : i32
    return %arg0, %c0_i32 : i32, i32
  }
}

</mosaic_0001>

<llo_original>
// kernel: tpu_custom_call.1
$region0: #{tpu_custom_call.1}
  #allocation0 [shape = 'u32[]', space=smem, size = 0x4, offset = 0x4, fixed_abs, tag = 'smem constant byte address 0x4 - core index']
  #allocation1 [shape = 'u32[72,128]{1,0:T(1,128)}', space=vmem, size = 0x9000, scoped, tag = 'internal scratch']
  %s0 = inlined_call_operand.hbm [shape: f32[16,128], index: 0, kind: input, shape index: {}]
  %s1 = inlined_call_operand.hbm [shape: f32[16,128], index: 1, kind: input, shape index: {}]
  %s2 = inlined_call_operand.hbm [shape: f32[8,128], index: 2, kind: output, shape index: {}]
  %s3 = sld [smem:[#allocation0]]
  $region38: #{tpu_custom_call.1} parent=0
    _
  %s5 = ssub.s32 1, %s3
  %s6 = scalar_select 0, %s5, %s3
  $region1: #{tpu_custom_call.1} parent=0
    #allocation2 [shape = 'u8[8192]{0}', space=vmem, size = 0x2000, scoped, tag = 'input window, operand 0, single buffered']
    #allocation3 [shape = 's32[1]{0}', space=sflag, size = 0x4, scoped, tag = 'scoped memory for tpu_custom_call.1']
    #allocation4 [shape = 's32[1]{0}', space=sflag, size = 0x4, scoped, tag = 'scoped memory for tpu_custom_call.1']
    #allocation5 [shape = 'u8[8192]{0}', space=vmem, size = 0x2000, scoped, tag = 'input window, operand 1, single buffered']
    #allocation6 [shape = 's32[1]{0}', space=sflag, size = 0x4, scoped, tag = 'scoped memory for tpu_custom_call.1']
    #allocation7 [shape = 'u8[4096]{0}', space=vmem, size = 0x1000, scoped, tag = 'output window, operand 0, single buffered']
    %7 = vsyncpa [#allocation3], 0
    %8 = vsyncpa [#allocation6], 0
    %9 = vsyncpa [#allocation4], 0
    // Predicated region
    $region2: #{tpu_custom_call.1} parent=1 // pred_check
      _
    $region3: #{tpu_custom_call.1} parent=1 // pred_check_branch
      %11 = sbr.rel (0) target = $region5
    $region4: #{tpu_custom_call.1} parent=1 // pred_region
      %s12 = sadd.s32 0, 0
      %p13 = scmp.lt.s32.totalorder %s12, 0
      %s14 = scalar_select %p13, %s12, 0
      %s15 = smul.u32 2, %s14
      %17 = vsyncadd [#allocation3], 0
      %s18 = smul.addr %s15, 8
      %s19 = scalar_lea.hbm %s0, %s18
      %s20 = sshll.u32 %s19, 4
      %s21 = int_to_ptr.hbm [resolvable:$true] %s20
      %s22 = sshll.u32 [#allocation2], 4
      %s23 = int_to_ptr.vmem [resolvable:$true] %s22
      %28 = dma.hbm_to_vmem [thread:$0]  %s21, 256, %s23, [#allocation3], 128, 128, 8
    $region5: #{tpu_custom_call.1} parent=1 // pred_fallthru
      _
    // Predicated region
    $region6: #{tpu_custom_call.1} parent=1 // pred_check
      _
    $region7: #{tpu_custom_call.1} parent=1 // pred_check_branch
      %30 = sbr.rel (0) target = $region9
    $region8: #{tpu_custom_call.1} parent=1 // pred_region
      %s31 = sadd.s32 0, 0
      %p32 = scmp.lt.s32.totalorder %s31, 0
      %s33 = scalar_select %p32, %s31, 0
      %s34 = smul.u32 2, %s33
      %36 = vsyncadd [#allocation6], 0
      %s37 = smul.addr %s34, 8
      %s38 = scalar_lea.hbm %s1, %s37
      %s39 = sshll.u32 %s38, 4
      %s40 = int_to_ptr.hbm [resolvable:$true] %s39
      %s41 = sshll.u32 [#allocation5], 4
      %s42 = int_to_ptr.vmem [resolvable:$true] %s41
      %47 = dma.hbm_to_vmem [thread:$0]  %s40, 256, %s42, [#allocation6], 128, 128, 8
    $region9: #{tpu_custom_call.1} parent=1 // pred_fallthru
      _
    // Predicated region
    $region10: #{tpu_custom_call.1} parent=1 // pred_check
      _
    $region11: #{tpu_custom_call.1} parent=1 // pred_check_branch
      %49 = sbr.rel (0) target = $region13
    $region12: #{tpu_custom_call.1} parent=1 // pred_region
      %51 = dma.done [#allocation3], 256
    $region13: #{tpu_custom_call.1} parent=1 // pred_fallthru
      _
    // Predicated region
    $region14: #{tpu_custom_call.1} parent=1 // pred_check
      _
    $region15: #{tpu_custom_call.1} parent=1 // pred_check_branch
      %53 = sbr.rel (0) target = $region17
    $region16: #{tpu_custom_call.1} parent=1 // pred_region
      %55 = dma.done [#allocation6], 256
    $region17: #{tpu_custom_call.1} parent=1 // pred_fallthru
      _
    %s56 = sadd.s32 0, 0
    %p57 = scmp.lt.s32.totalorder %s56, 0
    %s58 = scalar_select %p57, %s56, 0
    %s59 = smul.u32 2, %s58
    %s60 = sadd.s32 0, 0
    %p61 = scmp.lt.s32.totalorder %s60, 0
    %s62 = scalar_select %p61, %s60, 0
    %s63 = smul.u32 2, %s62
    %p64 = scmp.eq.s32.totalorder 0, 0
    // Predicated region
    $region18: #{tpu_custom_call.1} parent=1 // pred_check
      %p65 = pneg %p64
    $region19: #{tpu_custom_call.1} parent=1 // pred_check_branch
      %67 = sbr.rel (%p65) target = $region21
    $region20: #{tpu_custom_call.1} parent=1 // pred_region
      %68 = vst [vmem:[#allocation7] sm:$0xff] 0.0
    $region21: #{tpu_custom_call.1} parent=1 // pred_fallthru
      _
    %s69 = sadd.s32 0, 0
    %s70 = smul.u32 %s69, 16
    %s71 = sadd.s32 %s70, 16
    %p72 = scmp.le.s32.totalorder %s71, 16
    // Predicated region
    $region22: #{tpu_custom_call.1} parent=1 // pred_check
      %p73 = pneg %p72
    $region23: #{tpu_custom_call.1} parent=1 // pred_check_branch
      %75 = sbr.rel (%p73) target = $region25
    $region24: #{tpu_custom_call.1} parent=1 // pred_region
      %v76 = vld [vmem:[#allocation7] sm:$0xff]
      %v77 = vld [vmem:[#allocation2] sm:$0xff]
      %v78 = vld [vmem:[#allocation2 + $0x8] sm:$0xff]
      %v79 = vld [vmem:[#allocation5] sm:$0xff]
      %v80 = vld [vmem:[#allocation5 + $0x8] sm:$0xff]
      %v81 = vsub.f32 %v77, %v79
      %v82 = vsub.f32 %v78, %v80
      %v83 = vmul.f32 %v81, %v81
      %v84 = vmul.f32 %v82, %v82
      %v85 = vadd.f32 %v83, %v84
      %v86 = vadd.f32 %v85, 0.0
      %v87 = vadd.f32 %v76, %v86
      %88 = vst [vmem:[#allocation7] sm:$0xff] %v87
    $region25: #{tpu_custom_call.1} parent=1 // pred_fallthru
      _
    %p89 = scmp.gt.s32.totalorder %s71, 16
    // Predicated region
    $region26: #{tpu_custom_call.1} parent=1 // pred_check
      %p90 = pneg %p89
    $region27: #{tpu_custom_call.1} parent=1 // pred_check_branch
      %92 = sbr.rel (%p90) target = $region29
    $region28: #{tpu_custom_call.1} parent=1 // pred_region
      %v93 = vld [vmem:[#allocation7] sm:$0xff]
      %v94 = vld [vmem:[#allocation2] sm:$0xff]
      %v95 = vld [vmem:[#allocation2 + $0x8] sm:$0xff]
      %v96 = vld [vmem:[#allocation5] sm:$0xff]
      %v97 = vld [vmem:[#allocation5 + $0x8] sm:$0xff]
      %v98 = vsub.f32 %v94, %v96
      %v99 = vsub.f32 %v95, %v97
      %v100 = vmul.f32 %v98, %v98
      %v101 = vmul.f32 %v99, %v99
      %s102 = sadd.s32 %s70, 0
      %v103 = vlaneseq
      %v104 = vshrl.u32 %v103, 7
      %v105 = vadd.s32 %v104, 8
      %v106 = vstv %s102
      %v107 = vadd.s32 %v106, %v104
      %v108 = vadd.s32 %v106, %v105
      %vm109 = vcmp.lt.s32.totalorder %v107, 16
      %vm110 = vcmp.lt.s32.totalorder %v108, 16
      %v111 = vsel %vm109, %v100, 0.0
      %v112 = vsel %vm110, %v101, 0.0
      %v113 = vadd.f32 %v111, %v112
      %v114 = vadd.f32 %v113, 0.0
      %v115 = vadd.f32 %v93, %v114
      %116 = vst [vmem:[#allocation7] sm:$0xff] %v115
    $region29: #{tpu_custom_call.1} parent=1 // pred_fallthru
      _
    // Predicated region
    $region30: #{tpu_custom_call.1} parent=1 // pred_check
      _
    $region31: #{tpu_custom_call.1} parent=1 // pred_check_branch
      %118 = sbr.rel (0) target = $region33
    $region32: #{tpu_custom_call.1} parent=1 // pred_region
      %120 = vsyncadd [#allocation4], 0
      %s122 = sshll.u32 [#allocation7], 4
      %s123 = int_to_ptr.vmem [resolvable:$true] %s122
      %s124 = sshll.u32 %s2, 4
      %s125 = int_to_ptr.hbm [resolvable:$true] %s124
      %127 = dma.vmem_to_hbm [thread:$0]  %s123, 128, %s125, [#allocation4]
    $region33: #{tpu_custom_call.1} parent=1 // pred_fallthru
      _
    // Predicated region
    $region34: #{tpu_custom_call.1} parent=1 // pred_check
      _
    $region35: #{tpu_custom_call.1} parent=1 // pred_check_branch
      %129 = sbr.rel (0) target = $region37
    $region36: #{tpu_custom_call.1} parent=1 // pred_region
      %131 = dma.done [#allocation4], 128
    $region37: #{tpu_custom_call.1} parent=1 // pred_fallthru
      _
    %132 = vsyncpa [#allocation3], 1
    %133 = vsyncpa [#allocation6], 1
    %134 = vsyncpa [#allocation4], 1

</llo_original>
